<compile_context>
chip_gen: v5e
topology: v5e:2x2
jax: 0.10.0
libtpu: 0.0.40
codegen_flags: <defaults>
</compile_context>

<pallas_src>
import functools

import jax
import jax.numpy as jnp
from jax.experimental import pallas as pl
from jax.experimental.pallas import tpu as pltpu

EPS = 1e-5


def conv_bn_kernel(xp_ref, w_ref, mask_ref, aff_ref, o_ref, *, n_batch, height,
                   width, kh_dim, kw_dim, pad_h, pad_w, residual):
    """Single-program forward pass (everything fits VMEM at these shapes).

    xp_ref   : (Cin,  N*HW + 2*zpad)  flat channel-major input, lane-padded, bf16
    w_ref    : (Cout, KH*KW*Cin)      conv weights, bf16
    mask_ref : (KH*KW, N*HW)          0/1 per-tap halo masks, bf16
    aff_ref  : (Cout, 3)              per-channel [conv bias, BN gamma, BN beta], f32
    o_ref    : (Cout, N*HW)           flat channel-major output, f32
    """
    hw = height * width
    nhw = n_batch * hw
    zpad = pad_h * width + pad_w

    xp = xp_ref[...]        # (Cin, N*HW + 2*zpad) bf16
    mask = mask_ref[...]    # (KH*KW, N*HW)        bf16
    aff = aff_ref[...]      # (Cout, 3)            f32

    # K*K shifted copies of the input as pure static lane slices of the globally
    # lane-padded rows; the host-precomputed 0/1 mask zeroes the H halo (which also
    # kills inter-sample wrap-around in the flat N*H*W layout) and the W wrap.
    taps = []
    t = 0
    for kh in range(kh_dim):
        dh = kh - pad_h
        for kw in range(kw_dim):
            dw = kw - pad_w
            start = zpad + dh * width + dw
            tap = xp[:, start:start + nhw]                     # (Cin, N*HW) bf16
            if dh != 0 or dw != 0:                             # centre tap: no mask
                tap = tap * mask[t:t + 1, :]
            taps.append(tap)
            t += 1
    xcat = jnp.concatenate(taps, axis=0)                       # (KH*KW*Cin, N*HW)

    # Convolution: one bf16 MXU matmul with f32 accumulation, then bias + ReLU.
    y = jnp.dot(w_ref[...], xcat, preferred_element_type=jnp.float32)  # (Cout, N*HW)
    y = jnp.maximum(y + aff[:, 0:1], 0.0)

    # BatchNorm2d training-mode (biased) batch statistics: rows ARE channels, so the
    # reduction over N*H*W is a plain lane reduce (no averaging matmul needed).
    inv_n = 1.0 / float(nhw)
    mean = jnp.sum(y, axis=1, keepdims=True) * inv_n           # (Cout, 1)
    centered = y - mean
    var = jnp.sum(centered * centered, axis=1, keepdims=True) * inv_n
    scale = jax.lax.rsqrt(var + EPS) * aff[:, 1:2]             # gamma folded into rsqrt
    y = centered * scale + aff[:, 2:3]

    # Optional residual (Cin == Cout asserted in the wrapper) + final ReLU.
    if residual:
        y = y + xp[:, zpad:zpad + nhw].astype(jnp.float32)
    o_ref[...] = jnp.maximum(y, 0.0).astype(o_ref.dtype)       # lane-dense store


def conv2d_block(x_nchw, w_oihw, bias, gamma, beta, *, stride, padding, residual):
    """NCHW in, NCHW out (matches the PyTorch module)."""
    n, cin, h, w = x_nchw.shape
    cout, cin_w, kh, kw = w_oihw.shape
    assert cin_w == cin
    # TODO(synk): stride > 1 / non-'same' padding need a lane gather or an
    # index_map-strided grid instead of pure lane slices; the module config under
    # test (k=3, s=1, p=1) and any residual config satisfy these constraints.
    assert stride == 1, "kernel specialised to stride == 1"
    assert 2 * padding == kh - 1 and 2 * padding == kw - 1, (
        "kernel specialised to 'same' convolutions (2*padding == k-1)")
    if residual:
        assert cin == cout, "residual add requires cin == cout"

    f32, bf16 = jnp.float32, jnp.bfloat16
    hw = h * w
    nhw = n * hw
    zpad = padding * w + padding

    # Channel-major flat activations: batch on the lane axis, bf16 for the MXU,
    # tiny global 1-D lane pad (H-direction halos handled by the per-tap masks).
    x_flat = jnp.transpose(x_nchw, (1, 0, 2, 3)).reshape(cin, nhw).astype(bf16)
    x_pad = jnp.pad(x_flat, ((0, 0), (zpad, zpad)))

    # Weights as one (Cout, KH*KW*Cin) matrix; column order matches the kernel's tap
    # stacking ((kh, kw)-major, Cin within each tap).  No N factor, no zero blocks.
    w_mat = jnp.transpose(w_oihw.astype(bf16), (0, 2, 3, 1)).reshape(cout, kh * kw * cin)

    # Host-precomputed per-tap 0/1 halo masks: a lane is valid iff the shifted read
    # stays inside its own sample's HxW window.
    ho = (jnp.arange(nhw, dtype=jnp.int32) % hw) // w
    wo = jnp.arange(nhw, dtype=jnp.int32) % w
    mask_rows = []
    for kh_i in range(kh):
        dh = kh_i - padding
        for kw_i in range(kw):
            dw = kw_i - padding
            valid = (ho + dh >= 0) & (ho + dh < h) & (wo + dw >= 0) & (wo + dw < w)
            mask_rows.append(valid)
    mask = jnp.stack(mask_rows, axis=0).astype(bf16)           # (KH*KW, N*HW)

    # Per-channel [conv bias, BN gamma, BN beta], kept f32 for the VPU epilogue.
    aff = jnp.stack([bias.astype(f32), gamma.astype(f32), beta.astype(f32)], axis=1)

    kernel = functools.partial(
        conv_bn_kernel, n_batch=n, height=h, width=w,
        kh_dim=kh, kw_dim=kw, pad_h=padding, pad_w=padding, residual=residual)

    # VMEM budget derived from the actual buffers: inputs/output + im2col taps +
    # concat copy (bf16) + the f32 working set, with 2x headroom; floored at the
    # default scoped limit and capped under v7x's 64 MiB physical VMEM.
    kk_cin = kh * kw * cin
    io_bytes = (cin * (nhw + 2 * zpad) * 2 + cout * kk_cin * 2 + kh * kw * nhw * 2
                + cout * 3 * 4 + cout * nhw * 4)
    scratch_bytes = 2 * kk_cin * nhw * 2 + 4 * cout * nhw * 4
    vmem_limit = int(min(max(2 * (io_bytes + scratch_bytes), 32 << 20), 60 << 20))

    vmem = pl.BlockSpec(memory_space=pltpu.MemorySpace.VMEM)
    out_flat = pl.pallas_call(
        kernel,
        out_shape=jax.ShapeDtypeStruct((cout, nhw), f32),
        in_specs=[vmem, vmem, vmem, vmem],
        out_specs=vmem,
        compiler_params=pltpu.CompilerParams(vmem_limit_bytes=vmem_limit),
    )(x_pad, w_mat, mask, aff)

    return out_flat.reshape(cout, n, h, w).transpose(1, 0, 2, 3)


def reference_forward(x, w, b, gamma, beta, *, stride, padding, residual):
    """Pure-JAX reference mirroring the PyTorch module (training-mode BN)."""
    y = jax.lax.conv_general_dilated(
        x, w, (stride, stride), [(padding, padding)] * 2,
        dimension_numbers=("NCHW", "OIHW", "NCHW"))
    y = jnp.maximum(y + b.reshape(1, -1, 1, 1), 0.0)
    mean = jnp.mean(y, axis=(0, 2, 3), keepdims=True)
    var = jnp.mean((y - mean) ** 2, axis=(0, 2, 3), keepdims=True)
    y = (y - mean) * jax.lax.rsqrt(var + EPS)
    y = y * gamma.reshape(1, -1, 1, 1) + beta.reshape(1, -1, 1, 1)
    if residual:
        y = y + x
    return jnp.maximum(y, 0.0)


if __name__ == "__main__":
    # Module config: Conv2d(cin=4, cout=4, kernel_size=3, stride=1, padding=1, residual=True)
    N, Cin, H, W = 2, 4, 16, 16
    Cout, K, STRIDE, PAD = 4, 3, 1, 1
    RESIDUAL = True

    key = jax.random.PRNGKey(0)
    k_x, k_w, k_b, k_g, k_bt = jax.random.split(key, 5)
    x = jax.random.normal(k_x, (N, Cin, H, W), jnp.float32)
    w = jax.random.normal(k_w, (Cout, Cin, K, K), jnp.float32) * 0.1
    b = jax.random.normal(k_b, (Cout,), jnp.float32) * 0.1
    gamma = 1.0 + 0.1 * jax.random.normal(k_g, (Cout,), jnp.float32)
    beta = 0.1 * jax.random.normal(k_bt, (Cout,), jnp.float32)

    out = conv2d_block(x, w, b, gamma, beta,
                       stride=STRIDE, padding=PAD, residual=RESIDUAL)
    out = jax.block_until_ready(out)
    assert out.shape == (N, Cout, H, W)

    # The kernel quantises activations/weights to bf16 for the MXU (f32 accumulation);
    # compare against the reference fed the same bf16-rounded values.
    x_q = x.astype(jnp.bfloat16).astype(jnp.float32)
    w_q = w.astype(jnp.bfloat16).astype(jnp.float32)
    ref = reference_forward(x_q, w_q, b, gamma, beta,
                            stride=STRIDE, padding=PAD, residual=RESIDUAL)
    assert jnp.allclose(out, ref, atol=2e-3, rtol=2e-3), (
        f"max abs err {jnp.max(jnp.abs(out - ref))}")

    print("KERNEL_OK")
</pallas_src>

<mosaic_0001>
module attributes {stable_mosaic.version = 11 : i64} {
  func.func @conv_bn_kernel(%arg0: memref<4x546xbf16, #tpu.memory_space<vmem>>, %arg1: memref<4x36xbf16, #tpu.memory_space<vmem>>, %arg2: memref<9x512xbf16, #tpu.memory_space<vmem>>, %arg3: memref<4x3xf32, #tpu.memory_space<vmem>>, %arg4: memref<4x512xf32, #tpu.memory_space<vmem>>) attributes {dimension_semantics = [], scalar_prefetch = 0 : i64, scratch_operands = 0 : i64, tpu.core_type = #tpu.core_type<tc>} {
    %c0 = arith.constant 0 : index
    %c0_0 = arith.constant 0 : index
    %0 = vector.load %arg0[%c0, %c0_0] : memref<4x546xbf16, #tpu.memory_space<vmem>>, vector<4x546xbf16>
    %c0_1 = arith.constant 0 : index
    %c0_2 = arith.constant 0 : index
    %1 = vector.load %arg2[%c0_1, %c0_2] : memref<9x512xbf16, #tpu.memory_space<vmem>>, vector<9x512xbf16>
    %c0_3 = arith.constant 0 : index
    %c0_4 = arith.constant 0 : index
    %2 = vector.load %arg3[%c0_3, %c0_4] : memref<4x3xf32, #tpu.memory_space<vmem>>, vector<4x3xf32>
    %3 = vector.extract_strided_slice %0 {offsets = [0, 0], sizes = [4, 512], strides = [1, 1]} : vector<4x546xbf16> to vector<4x512xbf16>
    %4 = vector.extract_strided_slice %1 {offsets = [0, 0], sizes = [1, 512], strides = [1, 1]} : vector<9x512xbf16> to vector<1x512xbf16>
    %5 = vector.broadcast %4 : vector<1x512xbf16> to vector<4x512xbf16>
    %6 = arith.mulf %3, %5 : vector<4x512xbf16>
    %7 = vector.extract_strided_slice %0 {offsets = [0, 1], sizes = [4, 512], strides = [1, 1]} : vector<4x546xbf16> to vector<4x512xbf16>
    %8 = vector.extract_strided_slice %1 {offsets = [1, 0], sizes = [1, 512], strides = [1, 1]} : vector<9x512xbf16> to vector<1x512xbf16>
    %9 = vector.broadcast %8 : vector<1x512xbf16> to vector<4x512xbf16>
    %10 = arith.mulf %7, %9 : vector<4x512xbf16>
    %11 = vector.extract_strided_slice %0 {offsets = [0, 2], sizes = [4, 512], strides = [1, 1]} : vector<4x546xbf16> to vector<4x512xbf16>
    %12 = vector.extract_strided_slice %1 {offsets = [2, 0], sizes = [1, 512], strides = [1, 1]} : vector<9x512xbf16> to vector<1x512xbf16>
    %13 = vector.broadcast %12 : vector<1x512xbf16> to vector<4x512xbf16>
    %14 = arith.mulf %11, %13 : vector<4x512xbf16>
    %15 = vector.extract_strided_slice %0 {offsets = [0, 16], sizes = [4, 512], strides = [1, 1]} : vector<4x546xbf16> to vector<4x512xbf16>
    %16 = vector.extract_strided_slice %1 {offsets = [3, 0], sizes = [1, 512], strides = [1, 1]} : vector<9x512xbf16> to vector<1x512xbf16>
    %17 = vector.broadcast %16 : vector<1x512xbf16> to vector<4x512xbf16>
    %18 = arith.mulf %15, %17 : vector<4x512xbf16>
    %19 = vector.extract_strided_slice %0 {offsets = [0, 17], sizes = [4, 512], strides = [1, 1]} : vector<4x546xbf16> to vector<4x512xbf16>
    %20 = vector.extract_strided_slice %0 {offsets = [0, 18], sizes = [4, 512], strides = [1, 1]} : vector<4x546xbf16> to vector<4x512xbf16>
    %21 = vector.extract_strided_slice %1 {offsets = [5, 0], sizes = [1, 512], strides = [1, 1]} : vector<9x512xbf16> to vector<1x512xbf16>
    %22 = vector.broadcast %21 : vector<1x512xbf16> to vector<4x512xbf16>
    %23 = arith.mulf %20, %22 : vector<4x512xbf16>
    %24 = vector.extract_strided_slice %0 {offsets = [0, 32], sizes = [4, 512], strides = [1, 1]} : vector<4x546xbf16> to vector<4x512xbf16>
    %25 = vector.extract_strided_slice %1 {offsets = [6, 0], sizes = [1, 512], strides = [1, 1]} : vector<9x512xbf16> to vector<1x512xbf16>
    %26 = vector.broadcast %25 : vector<1x512xbf16> to vector<4x512xbf16>
    %27 = arith.mulf %24, %26 : vector<4x512xbf16>
    %28 = vector.extract_strided_slice %0 {offsets = [0, 33], sizes = [4, 512], strides = [1, 1]} : vector<4x546xbf16> to vector<4x512xbf16>
    %29 = vector.extract_strided_slice %1 {offsets = [7, 0], sizes = [1, 512], strides = [1, 1]} : vector<9x512xbf16> to vector<1x512xbf16>
    %30 = vector.broadcast %29 : vector<1x512xbf16> to vector<4x512xbf16>
    %31 = arith.mulf %28, %30 : vector<4x512xbf16>
    %32 = vector.extract_strided_slice %0 {offsets = [0, 34], sizes = [4, 512], strides = [1, 1]} : vector<4x546xbf16> to vector<4x512xbf16>
    %33 = vector.extract_strided_slice %1 {offsets = [8, 0], sizes = [1, 512], strides = [1, 1]} : vector<9x512xbf16> to vector<1x512xbf16>
    %34 = vector.broadcast %33 : vector<1x512xbf16> to vector<4x512xbf16>
    %35 = arith.mulf %32, %34 : vector<4x512xbf16>
    %36 = tpu.concatenate %6, %10, %14, %18, %19, %23, %27, %31, %35 in 0 : vector<4x512xbf16>, vector<4x512xbf16>, vector<4x512xbf16>, vector<4x512xbf16>, vector<4x512xbf16>, vector<4x512xbf16>, vector<4x512xbf16>, vector<4x512xbf16>, vector<4x512xbf16> -> vector<36x512xbf16>
    %c0_5 = arith.constant 0 : index
    %c0_6 = arith.constant 0 : index
    %37 = vector.load %arg1[%c0_5, %c0_6] : memref<4x36xbf16, #tpu.memory_space<vmem>>, vector<4x36xbf16>
    %cst = arith.constant dense<0.000000e+00> : vector<4x512xf32>
    %38 = tpu.matmul %37, %36, %cst {dimension_numbers = #tpu.dot_dimension_numbers<[1], [0], [0], [1], [0, 0, 1, 1], [], []>} : vector<4x36xbf16>, vector<36x512xbf16>, vector<4x512xf32> -> vector<4x512xf32>
    %39 = vector.extract_strided_slice %2 {offsets = [0, 0], sizes = [4, 1], strides = [1, 1]} : vector<4x3xf32> to vector<4x1xf32>
    %40 = vector.broadcast %39 : vector<4x1xf32> to vector<4x512xf32>
    %41 = arith.addf %38, %40 : vector<4x512xf32>
    %cst_7 = arith.constant 0.000000e+00 : f32
    %42 = vector.broadcast %cst_7 : f32 to vector<4x512xf32>
    %43 = arith.maximumf %41, %42 : vector<4x512xf32>
    %cst_8 = arith.constant dense<0.000000e+00> : vector<4xf32>
    %44 = vector.multi_reduction <add>, %43, %cst_8 [1] : vector<4x512xf32> to vector<4xf32>
    %45 = vector.shape_cast %44 : vector<4xf32> to vector<4x1xf32>
    %cst_9 = arith.constant 0.001953125 : f32
    %46 = vector.broadcast %cst_9 : f32 to vector<4x1xf32>
    %47 = arith.mulf %45, %46 : vector<4x1xf32>
    %48 = vector.broadcast %47 : vector<4x1xf32> to vector<4x512xf32>
    %49 = arith.subf %43, %48 : vector<4x512xf32>
    %50 = arith.mulf %49, %49 : vector<4x512xf32>
    %cst_10 = arith.constant dense<0.000000e+00> : vector<4xf32>
    %51 = vector.multi_reduction <add>, %50, %cst_10 [1] : vector<4x512xf32> to vector<4xf32>
    %52 = vector.shape_cast %51 : vector<4xf32> to vector<4x1xf32>
    %cst_11 = arith.constant 0.001953125 : f32
    %53 = vector.broadcast %cst_11 : f32 to vector<4x1xf32>
    %54 = arith.mulf %52, %53 : vector<4x1xf32>
    %cst_12 = arith.constant 9.99999974E-6 : f32
    %55 = vector.broadcast %cst_12 : f32 to vector<4x1xf32>
    %56 = arith.addf %54, %55 : vector<4x1xf32>
    %57 = math.rsqrt %56 : vector<4x1xf32>
    %58 = vector.extract_strided_slice %2 {offsets = [0, 1], sizes = [4, 1], strides = [1, 1]} : vector<4x3xf32> to vector<4x1xf32>
    %59 = arith.mulf %57, %58 : vector<4x1xf32>
    %60 = vector.broadcast %59 : vector<4x1xf32> to vector<4x512xf32>
    %61 = arith.mulf %49, %60 : vector<4x512xf32>
    %62 = vector.extract_strided_slice %2 {offsets = [0, 2], sizes = [4, 1], strides = [1, 1]} : vector<4x3xf32> to vector<4x1xf32>
    %63 = vector.broadcast %62 : vector<4x1xf32> to vector<4x512xf32>
    %64 = arith.addf %61, %63 : vector<4x512xf32>
    %65 = vector.extract_strided_slice %0 {offsets = [0, 17], sizes = [4, 512], strides = [1, 1]} : vector<4x546xbf16> to vector<4x512xbf16>
    %66 = arith.extf %65 : vector<4x512xbf16> to vector<4x512xf32>
    %67 = arith.addf %64, %66 : vector<4x512xf32>
    %cst_13 = arith.constant 0.000000e+00 : f32
    %68 = vector.broadcast %cst_13 : f32 to vector<4x512xf32>
    %69 = arith.maximumf %67, %68 : vector<4x512xf32>
    %c0_14 = arith.constant 0 : index
    %c0_15 = arith.constant 0 : index
    %70 = vector.load %arg4[%c0_14, %c0_15] : memref<4x512xf32, #tpu.memory_space<vmem>>, vector<4x512xf32>
    tpu.vector_store %arg4[%c0_14, %c0_15], %69 {strides = array<i32>} : memref<4x512xf32, #tpu.memory_space<vmem>>, vector<4x512xf32>,
    return
  }
}

</mosaic_0001>

<llo_original>
// kernel: tpu_custom_call.1
$region0: #{tpu_custom_call.1}
  #allocation0 [shape = 'u32[]', space=smem, size = 0x4, offset = 0x4, fixed_abs, tag = 'smem constant byte address 0x4 - core index']
  #allocation1 [shape = 'u32[72,128]{1,0:T(1,128)}', space=vmem, size = 0x9000, scoped, tag = 'internal scratch']
  %s0 = inlined_call_operand.hbm [shape: bf16[4,546], index: 0, kind: input, shape index: {}]
  %s1 = inlined_call_operand.hbm [shape: bf16[4,36], index: 1, kind: input, shape index: {}]
  %s2 = inlined_call_operand.hbm [shape: bf16[9,512], index: 2, kind: input, shape index: {}]
  %s3 = inlined_call_operand.hbm [shape: f32[4,3], index: 3, kind: input, shape index: {}]
  %s4 = inlined_call_operand.hbm [shape: f32[4,512], index: 4, kind: output, shape index: {}]
  %s5 = sld [smem:[#allocation0]]
  $region42: #{tpu_custom_call.1} parent=0
    _
  %s7 = ssub.s32 1, %s5
  %s8 = scalar_select 0, %s7, %s5
  $region1: #{tpu_custom_call.1} parent=0
    #allocation2 [shape = 'u8[5120]{0}', space=vmem, size = 0x1400, scoped, tag = 'input window, operand 0, single buffered']
    #allocation3 [shape = 's32[1]{0}', space=sflag, size = 0x4, scoped, tag = 'scoped memory for tpu_custom_call.1']
    #allocation4 [shape = 's32[1]{0}', space=sflag, size = 0x4, scoped, tag = 'scoped memory for tpu_custom_call.1']
    #allocation5 [shape = 'u8[1024]{0}', space=vmem, size = 0x400, scoped, tag = 'input window, operand 1, single buffered']
    #allocation6 [shape = 's32[1]{0}', space=sflag, size = 0x4, scoped, tag = 'scoped memory for tpu_custom_call.1']
    #allocation7 [shape = 'u8[16384]{0}', space=vmem, size = 0x4000, scoped, tag = 'input window, operand 2, single buffered']
    #allocation8 [shape = 'u8[2048]{0}', space=vmem, size = 0x800, scoped, tag = 'input window, operand 3, single buffered']
    #allocation9 [shape = 's32[1]{0}', space=sflag, size = 0x4, scoped, tag = 'scoped memory for tpu_custom_call.1']
    #allocation10 [shape = 'u8[8192]{0}', space=vmem, size = 0x2000, scoped, tag = 'output window, operand 0, single buffered']
    %9 = vsyncpa [#allocation3], 0
    %10 = vsyncpa [#allocation6], 0
    %11 = vsyncpa [#allocation9], 0
    %12 = vsyncpa [#allocation4], 0
    // Predicated region
    $region2: #{tpu_custom_call.1} parent=1 // pred_check
      _
    $region3: #{tpu_custom_call.1} parent=1 // pred_check_branch
      %14 = sbr.rel (0) target = $region5
    $region4: #{tpu_custom_call.1} parent=1 // pred_region
      %16 = vsyncadd [#allocation3], 0
      %s18 = sshll.u32 %s0, 4
      %s19 = int_to_ptr.hbm [resolvable:$true] %s18
      %s20 = sshll.u32 [#allocation2], 4
      %s21 = int_to_ptr.vmem [resolvable:$true] %s20
      %23 = dma.hbm_to_vmem [thread:$0]  %s19, 160, %s21, [#allocation3]
    $region5: #{tpu_custom_call.1} parent=1 // pred_fallthru
      _
    // Predicated region
    $region6: #{tpu_custom_call.1} parent=1 // pred_check
      _
    $region7: #{tpu_custom_call.1} parent=1 // pred_check_branch
      %25 = sbr.rel (0) target = $region9
    $region8: #{tpu_custom_call.1} parent=1 // pred_region
      %27 = vsyncadd [#allocation6], 0
      %s29 = sshll.u32 %s1, 4
      %s30 = int_to_ptr.hbm [resolvable:$true] %s29
      %s31 = sshll.u32 [#allocation5], 4
      %s32 = int_to_ptr.vmem [resolvable:$true] %s31
      %34 = dma.hbm_to_vmem [thread:$0]  %s30, 32, %s32, [#allocation6]
    $region9: #{tpu_custom_call.1} parent=1 // pred_fallthru
      _
    // Predicated region
    $region10: #{tpu_custom_call.1} parent=1 // pred_check
      _
    $region11: #{tpu_custom_call.1} parent=1 // pred_check_branch
      %36 = sbr.rel (0) target = $region13
    $region12: #{tpu_custom_call.1} parent=1 // pred_region
      %38 = vsyncadd [#allocation6], 0
      %s39 = sshll.u32 %s2, 4
      %s40 = int_to_ptr.hbm [resolvable:$true] %s39
      %s41 = sshll.u32 [#allocation7], 4
      %s42 = int_to_ptr.vmem [resolvable:$true] %s41
      %47 = dma.hbm_to_vmem [thread:$0]  %s40, 512, %s42, [#allocation6], 256, 256, 16
    $region13: #{tpu_custom_call.1} parent=1 // pred_fallthru
      _
    // Predicated region
    $region14: #{tpu_custom_call.1} parent=1 // pred_check
      _
    $region15: #{tpu_custom_call.1} parent=1 // pred_check_branch
      %49 = sbr.rel (0) target = $region17
    $region16: #{tpu_custom_call.1} parent=1 // pred_region
      %51 = vsyncadd [#allocation9], 0
      %s53 = sshll.u32 %s3, 4
      %s54 = int_to_ptr.hbm [resolvable:$true] %s53
      %s55 = sshll.u32 [#allocation8], 4
      %s56 = int_to_ptr.vmem [resolvable:$true] %s55
      %58 = dma.hbm_to_vmem [thread:$0]  %s54, 64, %s56, [#allocation9]
    $region17: #{tpu_custom_call.1} parent=1 // pred_fallthru
      _
    // Predicated region
    $region18: #{tpu_custom_call.1} parent=1 // pred_check
      _
    $region19: #{tpu_custom_call.1} parent=1 // pred_check_branch
      %60 = sbr.rel (0) target = $region21
    $region20: #{tpu_custom_call.1} parent=1 // pred_region
      %62 = dma.done [#allocation3], 160
    $region21: #{tpu_custom_call.1} parent=1 // pred_fallthru
      _
    // Predicated region
    $region22: #{tpu_custom_call.1} parent=1 // pred_check
      _
    $region23: #{tpu_custom_call.1} parent=1 // pred_check_branch
      %64 = sbr.rel (0) target = $region25
    $region24: #{tpu_custom_call.1} parent=1 // pred_region
      %66 = dma.done [#allocation6], 32
    $region25: #{tpu_custom_call.1} parent=1 // pred_fallthru
      _
    // Predicated region
    $region26: #{tpu_custom_call.1} parent=1 // pred_check
      _
    $region27: #{tpu_custom_call.1} parent=1 // pred_check_branch
      %68 = sbr.rel (0) target = $region29
    $region28: #{tpu_custom_call.1} parent=1 // pred_region
      %70 = dma.done [#allocation6], 512
    $region29: #{tpu_custom_call.1} parent=1 // pred_fallthru
      _
    // Predicated region
    $region30: #{tpu_custom_call.1} parent=1 // pred_check
      _
    $region31: #{tpu_custom_call.1} parent=1 // pred_check_branch
      %72 = sbr.rel (0) target = $region33
    $region32: #{tpu_custom_call.1} parent=1 // pred_region
      %74 = dma.done [#allocation9], 64
    $region33: #{tpu_custom_call.1} parent=1 // pred_fallthru
      _
    %v76 = vld [vmem:[#allocation2] sm:$0xff]
    %v77 = vld [vmem:[#allocation2 + $0x8] sm:$0x3]
    %v78 = vld [vmem:[#allocation7] sm:$0xff]
    %v79 = vld [vmem:[#allocation7 + $0x8] sm:$0xff]
    %v80 = vld [vmem:[#allocation7 + $0x10] sm:$0x11]
    %v81 = vld [vmem:[#allocation7 + $0x18] sm:$0x11]
    %v82 = vld [vmem:[#allocation8] sm:$0xf]
    %v85 = vunpack.c.l.b16 %v78
    %v86 = vunpack.c.h.b16 %v78
    %v87 = vunpack.c.l.b16 %v79
    %v88 = vunpack.c.h.b16 %v79
    %v89 = vpack.c.b16 %v85, %v85
    %v90 = vpack.c.b16 %v86, %v86
    %v91 = vpack.c.b16 %v87, %v87
    %v92 = vpack.c.b16 %v88, %v88
    %v94 = vpack.i.b16 %v89, %v89
    %v96 = vperm.slane %v94, 0
    %v98 = vpack.i.b16 %v90, %v90
    %v100 = vperm.slane %v98, 0
    %v102 = vpack.i.b16 %v91, %v91
    %v104 = vperm.slane %v102, 0
    %v106 = vpack.i.b16 %v92, %v92
    %v108 = vperm.slane %v106, 0
    %v109 = vunpack.c.l.bf16 %v76
    %v110 = vunpack.c.h.bf16 %v76
    %v111 = vunpack.c.l.bf16 %v96
    %v112 = vunpack.c.l.bf16 %v100
    %v113 = vunpack.c.l.bf16 %v104
    %v114 = vunpack.c.l.bf16 %v108
    %v119 = vrot.slane %v112, 4
    %v120 = vrot.slane %v114, 4
    %vm121 = vcmask 1043456
    %v122 = vsel %vm121, %v111, %v119
    %v123 = vsel %vm121, %v113, %v120
    %v126 = vmul.f32 %v109, %v122
    %v127 = vmul.f32 %v110, %v123
    %130 = vst [vmem:[#allocation1] ss:$2 sm:$0xff] %v126
    %s131 = scalar_lea.vmem [#allocation1], 16
    %132 = vst [vmem:[%s131] ss:$2 sm:$0xff] %v127
    %v133 = vld.sshfl [vmem:[#allocation1] sm:$0xff pattern:$0x75316420]
    %v134 = vld.sshfl [vmem:[#allocation1 + $0x8] sm:$0xff pattern:$0x75316420]
    %v135 = vld.sshfl [vmem:[#allocation1 + $0x10] sm:$0xff pattern:$0x75316420]
    %v136 = vld.sshfl [vmem:[#allocation1 + $0x18] sm:$0xff pattern:$0x75316420]
    %v141 = vpack.c.bf16 %v134, %v133
    %v142 = vpack.c.bf16 %v136, %v135
    %v143 = vshrl.u32 %v89, 16
    %v144 = vpack.i.b16 %v143, %v143
    %v146 = vperm.slane %v144, 0
    %v147 = vshrl.u32 %v90, 16
    %v148 = vpack.i.b16 %v147, %v147
    %v150 = vperm.slane %v148, 0
    %v151 = vshrl.u32 %v91, 16
    %v152 = vpack.i.b16 %v151, %v151
    %v154 = vperm.slane %v152, 0
    %v155 = vshrl.u32 %v92, 16
    %v156 = vpack.i.b16 %v155, %v155
    %v158 = vperm.slane %v156, 0
    %v159 = vunpack.c.l.bf16 %v77
    %v160 = vunpack.c.l.bf16 %v146
    %v161 = vunpack.c.l.bf16 %v150
    %v162 = vunpack.c.l.bf16 %v154
    %v163 = vunpack.c.l.bf16 %v158
    %v168 = vrot.slane %v161, 4
    %v169 = vrot.slane %v163, 4
    %v170 = vsel %vm121, %v160, %v168
    %v171 = vsel %vm121, %v162, %v169
    %172 = vrot.lane.b32.xlu0 %v170, 1
    %v173 = vpop.permute.xlu0 %172
    %174 = vrot.lane.b32.xlu0 %v171, 1
    %v175 = vpop.permute.xlu0 %174
    %v176 = vrot.slane %v173, 4
    %v177 = vrot.slane %v175, 4
    %vm178 = vcmask 7168
    %v179 = vsel %vm178, %v176, %v173
    %v180 = vsel %vm121, %v176, %v177
    %v181 = vsel %vm178, %v180, %v175
    %v185 = vmul.f32 %v109, %v179
    %v186 = vmul.f32 %v110, %v181
    %v187 = vmul.f32 %v159, %v177
    %191 = vst [vmem:[#allocation1] ss:$2 sm:$0xff] %v185
    %s192 = scalar_lea.vmem [#allocation1], 16
    %193 = vst [vmem:[%s192] ss:$2 sm:$0xff] %v186
    %s194 = scalar_lea.vmem [#allocation1], 32
    %195 = vst [vmem:[%s194] ss:$2 sm:$0xff] %v187
    %v196 = vld.sshfl [vmem:[#allocation1] sm:$0xff pattern:$0x75316420]
    %v197 = vld.sshfl [vmem:[#allocation1 + $0x8] sm:$0xff pattern:$0x75316420]
    %v198 = vld.sshfl [vmem:[#allocation1 + $0x10] sm:$0xff pattern:$0x75316420]
    %v199 = vld.sshfl [vmem:[#allocation1 + $0x18] sm:$0xff pattern:$0x75316420]
    %v200 = vld.sshfl [vmem:[#allocation1 + $0x20] sm:$0xff pattern:$0x75316420]
    %v206 = vpack.c.bf16 %v197, %v196
    %v207 = vpack.c.bf16 %v199, %v198
    %v208 = vpack.c.bf16 %v200, %v200
    %v209 = vperm.slane %v94, 1
    %v210 = vperm.slane %v98, 1
    %v211 = vperm.slane %v102, 1
    %v212 = vperm.slane %v106, 1
    %v213 = vunpack.c.l.bf16 %v209
    %v214 = vunpack.c.l.bf16 %v210
    %v215 = vunpack.c.l.bf16 %v211
    %v216 = vunpack.c.l.bf16 %v212
    %v221 = vrot.slane %v214, 4
    %v222 = vrot.slane %v216, 4
    %v223 = vsel %vm121, %v213, %v221
    %v224 = vsel %vm121, %v215, %v222
    %225 = vrot.lane.b32.xlu0 %v223, 2
    %v226 = vpop.permute.xlu0 %225
    %227 = vrot.lane.b32.xlu0 %v224, 2
    %v228 = vpop.permute.xlu0 %227
    %v229 = vrot.slane %v226, 4
    %v230 = vrot.slane %v228, 4
    %vm231 = vcmask 15360
    %v232 = vsel %vm231, %v229, %v226
    %v233 = vsel %vm121, %v229, %v230
    %v234 = vsel %vm231, %v233, %v228
    %v238 = vmul.f32 %v109, %v232
    %v239 = vmul.f32 %v110, %v234
    %v240 = vmul.f32 %v159, %v230
    %244 = vst [vmem:[#allocation1] ss:$2 sm:$0xff] %v238
    %s245 = scalar_lea.vmem [#allocation1], 16
    %246 = vst [vmem:[%s245] ss:$2 sm:$0xff] %v239
    %s247 = scalar_lea.vmem [#allocation1], 32
    %248 = vst [vmem:[%s247] ss:$2 sm:$0xff] %v240
    %v249 = vld.sshfl [vmem:[#allocation1] sm:$0xff pattern:$0x75316420]
    %v250 = vld.sshfl [vmem:[#allocation1 + $0x8] sm:$0xff pattern:$0x75316420]
    %v251 = vld.sshfl [vmem:[#allocation1 + $0x10] sm:$0xff pattern:$0x75316420]
    %v252 = vld.sshfl [vmem:[#allocation1 + $0x18] sm:$0xff pattern:$0x75316420]
    %v253 = vld.sshfl [vmem:[#allocation1 + $0x20] sm:$0xff pattern:$0x75316420]
    %v259 = vpack.c.bf16 %v250, %v249
    %v260 = vpack.c.bf16 %v252, %v251
    %v261 = vpack.c.bf16 %v253, %v253
    %v262 = vperm.slane %v144, 1
    %v263 = vperm.slane %v148, 1
    %v264 = vperm.slane %v152, 1
    %v265 = vperm.slane %v156, 1
    %v266 = vunpack.c.l.bf16 %v262
    %v267 = vunpack.c.l.bf16 %v263
    %v268 = vunpack.c.l.bf16 %v264
    %v269 = vunpack.c.l.bf16 %v265
    %v274 = vrot.slane %v267, 4
    %v275 = vrot.slane %v269, 4
    %v276 = vsel %vm121, %v266, %v274
    %v277 = vsel %vm121, %v268, %v275
    %278 = vrot.lane.b32.xlu0 %v276, 16
    %v279 = vpop.permute.xlu0 %278
    %280 = vrot.lane.b32.xlu0 %v277, 16
    %v281 = vpop.permute.xlu0 %280
    %v282 = vrot.slane %v279, 4
    %v283 = vrot.slane %v281, 4
    %vm284 = vcmask 130048
    %v285 = vsel %vm284, %v282, %v279
    %v286 = vsel %vm121, %v282, %v283
    %v287 = vsel %vm284, %v286, %v281
    %v291 = vmul.f32 %v109, %v285
    %v292 = vmul.f32 %v110, %v287
    %v293 = vmul.f32 %v159, %v283
    %297 = vst [vmem:[#allocation1] ss:$2 sm:$0xff] %v291
    %s298 = scalar_lea.vmem [#allocation1], 16
    %299 = vst [vmem:[%s298] ss:$2 sm:$0xff] %v292
    %s300 = scalar_lea.vmem [#allocation1], 32
    %301 = vst [vmem:[%s300] ss:$2 sm:$0xff] %v293
    %v302 = vld.sshfl [vmem:[#allocation1] sm:$0xff pattern:$0x75316420]
    %v303 = vld.sshfl [vmem:[#allocation1 + $0x8] sm:$0xff pattern:$0x75316420]
    %v304 = vld.sshfl [vmem:[#allocation1 + $0x10] sm:$0xff pattern:$0x75316420]
    %v305 = vld.sshfl [vmem:[#allocation1 + $0x18] sm:$0xff pattern:$0x75316420]
    %v306 = vld.sshfl [vmem:[#allocation1 + $0x20] sm:$0xff pattern:$0x75316420]
    %v312 = vpack.c.bf16 %v303, %v302
    %v313 = vpack.c.bf16 %v305, %v304
    %v314 = vpack.c.bf16 %v306, %v306
    %v315 = vperm.slane %v144, 2
    %v316 = vperm.slane %v148, 2
    %v317 = vperm.slane %v152, 2
    %v318 = vperm.slane %v156, 2
    %v319 = vunpack.c.l.bf16 %v315
    %v320 = vunpack.c.l.bf16 %v316
    %v321 = vunpack.c.l.bf16 %v317
    %v322 = vunpack.c.l.bf16 %v318
    %v327 = vrot.slane %v320, 4
    %v328 = vrot.slane %v322, 4
    %v329 = vsel %vm121, %v319, %v327
    %v330 = vsel %vm121, %v321, %v328
    %331 = vrot.lane.b32.xlu0 %v329, 18
    %v332 = vpop.permute.xlu0 %331
    %333 = vrot.lane.b32.xlu0 %v330, 18
    %v334 = vpop.permute.xlu0 %333
    %v335 = vrot.slane %v332, 4
    %v336 = vrot.slane %v334, 4
    %vm337 = vcmask 146432
    %v338 = vsel %vm337, %v335, %v332
    %v339 = vsel %vm121, %v335, %v336
    %v340 = vsel %vm337, %v339, %v334
    %v344 = vmul.f32 %v109, %v338
    %v345 = vmul.f32 %v110, %v340
    %v346 = vmul.f32 %v159, %v336
    %350 = vst [vmem:[#allocation1] ss:$2 sm:$0xff] %v344
    %s351 = scalar_lea.vmem [#allocation1], 16
    %352 = vst [vmem:[%s351] ss:$2 sm:$0xff] %v345
    %s353 = scalar_lea.vmem [#allocation1], 32
    %354 = vst [vmem:[%s353] ss:$2 sm:$0xff] %v346
    %v355 = vld.sshfl [vmem:[#allocation1] sm:$0xff pattern:$0x75316420]
    %v356 = vld.sshfl [vmem:[#allocation1 + $0x8] sm:$0xff pattern:$0x75316420]
    %v357 = vld.sshfl [vmem:[#allocation1 + $0x10] sm:$0xff pattern:$0x75316420]
    %v358 = vld.sshfl [vmem:[#allocation1 + $0x18] sm:$0xff pattern:$0x75316420]
    %v359 = vld.sshfl [vmem:[#allocation1 + $0x20] sm:$0xff pattern:$0x75316420]
    %v365 = vpack.c.bf16 %v356, %v355
    %v366 = vpack.c.bf16 %v358, %v357
    %v367 = vpack.c.bf16 %v359, %v359
    %v368 = vperm.slane %v94, 3
    %v369 = vperm.slane %v98, 3
    %v370 = vperm.slane %v102, 3
    %v371 = vperm.slane %v106, 3
    %v372 = vunpack.c.l.bf16 %v368
    %v373 = vunpack.c.l.bf16 %v369
    %v374 = vunpack.c.l.bf16 %v370
    %v375 = vunpack.c.l.bf16 %v371
    %v380 = vrot.slane %v373, 4
    %v381 = vrot.slane %v375, 4
    %v382 = vsel %vm121, %v372, %v380
    %v383 = vsel %vm121, %v374, %v381
    %384 = vrot.lane.b32.xlu0 %v382, 32
    %v385 = vpop.permute.xlu0 %384
    %386 = vrot.lane.b32.xlu0 %v383, 32
    %v387 = vpop.permute.xlu0 %386
    %v388 = vrot.slane %v385, 4
    %v389 = vrot.slane %v387, 4
    %vm390 = vcmask 261120
    %v391 = vsel %vm390, %v388, %v385
    %v392 = vsel %vm121, %v388, %v389
    %v393 = vsel %vm390, %v392, %v387
    %v397 = vmul.f32 %v109, %v391
    %v398 = vmul.f32 %v110, %v393
    %v399 = vmul.f32 %v159, %v389
    %403 = vst [vmem:[#allocation1] ss:$2 sm:$0xff] %v397
    %s404 = scalar_lea.vmem [#allocation1], 16
    %405 = vst [vmem:[%s404] ss:$2 sm:$0xff] %v398
    %s406 = scalar_lea.vmem [#allocation1], 32
    %407 = vst [vmem:[%s406] ss:$2 sm:$0xff] %v399
    %v408 = vld.sshfl [vmem:[#allocation1] sm:$0xff pattern:$0x75316420]
    %v409 = vld.sshfl [vmem:[#allocation1 + $0x8] sm:$0xff pattern:$0x75316420]
    %v410 = vld.sshfl [vmem:[#allocation1 + $0x10] sm:$0xff pattern:$0x75316420]
    %v411 = vld.sshfl [vmem:[#allocation1 + $0x18] sm:$0xff pattern:$0x75316420]
    %v412 = vld.sshfl [vmem:[#allocation1 + $0x20] sm:$0xff pattern:$0x75316420]
    %v418 = vpack.c.bf16 %v409, %v408
    %v419 = vpack.c.bf16 %v411, %v410
    %v420 = vpack.c.bf16 %v412, %v412
    %v421 = vperm.slane %v144, 3
    %v422 = vperm.slane %v148, 3
    %v423 = vperm.slane %v152, 3
    %v424 = vperm.slane %v156, 3
    %v425 = vunpack.c.l.bf16 %v421
    %v426 = vunpack.c.l.bf16 %v422
    %v427 = vunpack.c.l.bf16 %v423
    %v428 = vunpack.c.l.bf16 %v424
    %v433 = vrot.slane %v426, 4
    %v434 = vrot.slane %v428, 4
    %v435 = vsel %vm121, %v425, %v433
    %v436 = vsel %vm121, %v427, %v434
    %437 = vrot.lane.b32.xlu0 %v435, 33
    %v438 = vpop.permute.xlu0 %437
    %439 = vrot.lane.b32.xlu0 %v436, 33
    %v440 = vpop.permute.xlu0 %439
    %v441 = vrot.slane %v438, 4
    %v442 = vrot.slane %v440, 4
    %vm443 = vcmask 269312
    %v444 = vsel %vm443, %v441, %v438
    %v445 = vsel %vm121, %v441, %v442
    %v446 = vsel %vm443, %v445, %v440
    %v450 = vmul.f32 %v109, %v444
    %v451 = vmul.f32 %v110, %v446
    %v452 = vmul.f32 %v159, %v442
    %456 = vst [vmem:[#allocation1] ss:$2 sm:$0xff] %v450
    %s457 = scalar_lea.vmem [#allocation1], 16
    %458 = vst [vmem:[%s457] ss:$2 sm:$0xff] %v451
    %s459 = scalar_lea.vmem [#allocation1], 32
    %460 = vst [vmem:[%s459] ss:$2 sm:$0xff] %v452
    %v461 = vld.sshfl [vmem:[#allocation1] sm:$0xff pattern:$0x75316420]
    %v462 = vld.sshfl [vmem:[#allocation1 + $0x8] sm:$0xff pattern:$0x75316420]
    %v463 = vld.sshfl [vmem:[#allocation1 + $0x10] sm:$0xff pattern:$0x75316420]
    %v464 = vld.sshfl [vmem:[#allocation1 + $0x18] sm:$0xff pattern:$0x75316420]
    %v465 = vld.sshfl [vmem:[#allocation1 + $0x20] sm:$0xff pattern:$0x75316420]
    %v471 = vpack.c.bf16 %v462, %v461
    %v472 = vpack.c.bf16 %v464, %v463
    %v473 = vpack.c.bf16 %v465, %v465
    %v476 = vunpack.c.l.b16 %v80
    %v477 = vunpack.c.h.b16 %v80
    %v478 = vunpack.c.l.b16 %v81
    %v479 = vunpack.c.h.b16 %v81
    %v480 = vpack.c.b16 %v476, %v476
    %v481 = vpack.c.b16 %v477, %v477
    %v482 = vpack.c.b16 %v478, %v478
    %v483 = vpack.c.b16 %v479, %v479
    %v485 = vpack.i.b16 %v480, %v480
    %v487 = vperm.slane %v485, 0
    %v489 = vpack.i.b16 %v481, %v481
    %v491 = vperm.slane %v489, 0
    %v493 = vpack.i.b16 %v482, %v482
    %v495 = vperm.slane %v493, 0
    %v497 = vpack.i.b16 %v483, %v483
    %v499 = vperm.slane %v497, 0
    %v500 = vunpack.c.l.bf16 %v487
    %v501 = vunpack.c.l.bf16 %v491
    %v502 = vunpack.c.l.bf16 %v495
    %v503 = vunpack.c.l.bf16 %v499
    %v508 = vrot.slane %v501, 4
    %v509 = vrot.slane %v503, 4
    %v510 = vsel %vm121, %v500, %v508
    %v511 = vsel %vm121, %v502, %v509
    %512 = vrot.lane.b32.xlu0 %v510, 34
    %v513 = vpop.permute.xlu0 %512
    %514 = vrot.lane.b32.xlu0 %v511, 34
    %v515 = vpop.permute.xlu0 %514
    %v516 = vrot.slane %v513, 4
    %v517 = vrot.slane %v515, 4
    %vm518 = vcmask 277504
    %v519 = vsel %vm518, %v516, %v513
    %v520 = vsel %vm121, %v516, %v517
    %v521 = vsel %vm518, %v520, %v515
    %v525 = vmul.f32 %v109, %v519
    %v526 = vmul.f32 %v110, %v521
    %v527 = vmul.f32 %v159, %v517
    %531 = vst [vmem:[#allocation1] ss:$2 sm:$0xff] %v525
    %s532 = scalar_lea.vmem [#allocation1], 16
    %533 = vst [vmem:[%s532] ss:$2 sm:$0xff] %v526
    %s534 = scalar_lea.vmem [#allocation1], 32
    %535 = vst [vmem:[%s534] ss:$2 sm:$0xff] %v527
    %v536 = vld.sshfl [vmem:[#allocation1] sm:$0xff pattern:$0x75316420]
    %v537 = vld.sshfl [vmem:[#allocation1 + $0x8] sm:$0xff pattern:$0x75316420]
    %v538 = vld.sshfl [vmem:[#allocation1 + $0x10] sm:$0xff pattern:$0x75316420]
    %v539 = vld.sshfl [vmem:[#allocation1 + $0x18] sm:$0xff pattern:$0x75316420]
    %v540 = vld.sshfl [vmem:[#allocation1 + $0x20] sm:$0xff pattern:$0x75316420]
    %v546 = vpack.c.bf16 %v537, %v536
    %v547 = vpack.c.bf16 %v539, %v538
    %v548 = vpack.c.bf16 %v540, %v540
    %v551 = vunpack.c.l.b16 %v141
    %v552 = vunpack.c.h.b16 %v141
    %v553 = vunpack.c.l.b16 %v142
    %v554 = vunpack.c.h.b16 %v142
    %v555 = vpack.c.b16 %v551, %v551
    %v556 = vpack.c.b16 %v552, %v552
    %v557 = vpack.c.b16 %v553, %v553
    %v558 = vpack.c.b16 %v554, %v554
    %v562 = vunpack.c.l.b16 %v206
    %v563 = vunpack.c.h.b16 %v206
    %v564 = vunpack.c.l.b16 %v207
    %v565 = vunpack.c.h.b16 %v207
    %v566 = vunpack.c.l.b16 %v208
    %v567 = vpack.c.b16 %v562, %v562
    %v568 = vpack.c.b16 %v563, %v563
    %v569 = vpack.c.b16 %v564, %v564
    %v570 = vpack.c.b16 %v565, %v565
    %v571 = vpack.c.b16 %v566, %v566
    %v572 = vrot.slane %v567, 6
    %v573 = vrot.slane %v568, 6
    %v574 = vrot.slane %v569, 6
    %v575 = vrot.slane %v570, 6
    %v576 = vrot.slane %v571, 6
    %577 = vrot.lane.b32.xlu0 %v572, 127
    %v578 = vpop.permute.xlu0 %577
    %579 = vrot.lane.b32.xlu0 %v573, 127
    %v580 = vpop.permute.xlu0 %579
    %581 = vrot.lane.b32.xlu0 %v574, 127
    %v582 = vpop.permute.xlu0 %581
    %583 = vrot.lane.b32.xlu0 %v575, 127
    %v584 = vpop.permute.xlu0 %583
    %585 = vrot.lane.b32.xlu0 %v576, 127
    %v586 = vpop.permute.xlu0 %585
    %vm587 = vcmask 1039360
    %v588 = vsel %vm587, %v578, %v580
    %v589 = vsel %vm587, %v580, %v582
    %v590 = vsel %vm587, %v582, %v584
    %v591 = vsel %vm587, %v584, %v586
    %v595 = vunpack.c.l.b16 %v259
    %v596 = vunpack.c.h.b16 %v259
    %v597 = vunpack.c.l.b16 %v260
    %v598 = vunpack.c.h.b16 %v260
    %v599 = vunpack.c.l.b16 %v261
    %v600 = vpack.c.b16 %v595, %v595
    %v601 = vpack.c.b16 %v596, %v596
    %v602 = vpack.c.b16 %v597, %v597
    %v603 = vpack.c.b16 %v598, %v598
    %v604 = vpack.c.b16 %v599, %v599
    %605 = vrot.lane.b32.xlu0 %v600, 126
    %v606 = vpop.permute.xlu0 %605
    %607 = vrot.lane.b32.xlu0 %v601, 126
    %v608 = vpop.permute.xlu0 %607
    %609 = vrot.lane.b32.xlu0 %v602, 126
    %v610 = vpop.permute.xlu0 %609
    %611 = vrot.lane.b32.xlu0 %v603, 126
    %v612 = vpop.permute.xlu0 %611
    %613 = vrot.lane.b32.xlu0 %v604, 126
    %v614 = vpop.permute.xlu0 %613
    %vm615 = vcmask 1031168
    %v616 = vsel %vm615, %v606, %v608
    %v617 = vsel %vm615, %v608, %v610
    %v618 = vsel %vm615, %v610, %v612
    %v619 = vsel %vm615, %v612, %v614
    %v623 = vunpack.c.l.b16 %v312
    %v624 = vunpack.c.h.b16 %v312
    %v625 = vunpack.c.l.b16 %v313
    %v626 = vunpack.c.h.b16 %v313
    %v627 = vunpack.c.l.b16 %v314
    %v628 = vpack.c.b16 %v623, %v623
    %v629 = vpack.c.b16 %v624, %v624
    %v630 = vpack.c.b16 %v625, %v625
    %v631 = vpack.c.b16 %v626, %v626
    %v632 = vpack.c.b16 %v627, %v627
    %v633 = vrot.slane %v628, 2
    %v634 = vrot.slane %v629, 2
    %v635 = vrot.slane %v630, 2
    %v636 = vrot.slane %v631, 2
    %v637 = vrot.slane %v632, 2
    %638 = vrot.lane.b32.xlu0 %v633, 112
    %v639 = vpop.permute.xlu0 %638
    %640 = vrot.lane.b32.xlu0 %v634, 112
    %v641 = vpop.permute.xlu0 %640
    %642 = vrot.lane.b32.xlu0 %v635, 112
    %v643 = vpop.permute.xlu0 %642
    %644 = vrot.lane.b32.xlu0 %v636, 112
    %v645 = vpop.permute.xlu0 %644
    %646 = vrot.lane.b32.xlu0 %v637, 112
    %v647 = vpop.permute.xlu0 %646
    %vm648 = vcmask 916480
    %v649 = vsel %vm648, %v639, %v641
    %v650 = vsel %vm648, %v641, %v643
    %v651 = vsel %vm648, %v643, %v645
    %v652 = vsel %vm648, %v645, %v647
    %654 = vst [vmem:[#allocation1] ss:$4 sm:$0xff] %v76
    %s656 = scalar_lea.vmem [#allocation1], 32
    %657 = vst [vmem:[%s656] ss:$4 sm:$0xff] %v77
    %v658 = vld.sshfl [vmem:[#allocation1] sm:$0xff pattern:$0x73625140]
    %v660 = vld.sshfl [vmem:[#allocation1 + $0x8] sm:$0xff pattern:$0x73625140]
    %v662 = vld.sshfl [vmem:[#allocation1 + $0x10] sm:$0xff pattern:$0x73625140]
    %v664 = vld.sshfl [vmem:[#allocation1 + $0x18] sm:$0xff pattern:$0x73625140]
    %v666 = vld.sshfl [vmem:[#allocation1 + $0x20] sm:$0xff pattern:$0x73625140]
    %668 = vrot.lane.b32.xlu0 %v658, 111
    %v669 = vpop.permute.xlu0 %668
    %670 = vrot.lane.b32.xlu0 %v660, 111
    %v671 = vpop.permute.xlu0 %670
    %672 = vrot.lane.b32.xlu0 %v662, 111
    %v673 = vpop.permute.xlu0 %672
    %674 = vrot.lane.b32.xlu0 %v664, 111
    %v675 = vpop.permute.xlu0 %674
    %676 = vrot.lane.b32.xlu0 %v666, 111
    %v677 = vpop.permute.xlu0 %676
    %vm678 = vcmask 908288
    %v679 = vsel %vm678, %v669, %v671
    %v680 = vsel %vm678, %v671, %v673
    %v681 = vsel %vm678, %v673, %v675
    %v682 = vsel %vm678, %v675, %v677
    %v686 = vunpack.c.l.b16 %v365
    %v687 = vunpack.c.h.b16 %v365
    %v688 = vunpack.c.l.b16 %v366
    %v689 = vunpack.c.h.b16 %v366
    %v690 = vunpack.c.l.b16 %v367
    %v691 = vpack.c.b16 %v686, %v686
    %v692 = vpack.c.b16 %v687, %v687
    %v693 = vpack.c.b16 %v688, %v688
    %v694 = vpack.c.b16 %v689, %v689
    %v695 = vpack.c.b16 %v690, %v690
    %v696 = vrot.slane %v691, 6
    %v697 = vrot.slane %v692, 6
    %v698 = vrot.slane %v693, 6
    %v699 = vrot.slane %v694, 6
    %v700 = vrot.slane %v695, 6
    %701 = vrot.lane.b32.xlu0 %v696, 110
    %v702 = vpop.permute.xlu0 %701
    %703 = vrot.lane.b32.xlu0 %v697, 110
    %v704 = vpop.permute.xlu0 %703
    %705 = vrot.lane.b32.xlu0 %v698, 110
    %v706 = vpop.permute.xlu0 %705
    %707 = vrot.lane.b32.xlu0 %v699, 110
    %v708 = vpop.permute.xlu0 %707
    %709 = vrot.lane.b32.xlu0 %v700, 110
    %v710 = vpop.permute.xlu0 %709
    %vm711 = vcmask 900096
    %v712 = vsel %vm711, %v702, %v704
    %v713 = vsel %vm711, %v704, %v706
    %v714 = vsel %vm711, %v706, %v708
    %v715 = vsel %vm711, %v708, %v710
    %v719 = vunpack.c.l.b16 %v418
    %v720 = vunpack.c.h.b16 %v418
    %v721 = vunpack.c.l.b16 %v419
    %v722 = vunpack.c.h.b16 %v419
    %v723 = vunpack.c.l.b16 %v420
    %v724 = vpack.c.b16 %v719, %v719
    %v725 = vpack.c.b16 %v720, %v720
    %v726 = vpack.c.b16 %v721, %v721
    %v727 = vpack.c.b16 %v722, %v722
    %v728 = vpack.c.b16 %v723, %v723
    %729 = vrot.lane.b32.xlu0 %v724, 96
    %v730 = vpop.permute.xlu0 %729
    %731 = vrot.lane.b32.xlu0 %v725, 96
    %v732 = vpop.permute.xlu0 %731
    %733 = vrot.lane.b32.xlu0 %v726, 96
    %v734 = vpop.permute.xlu0 %733
    %735 = vrot.lane.b32.xlu0 %v727, 96
    %v736 = vpop.permute.xlu0 %735
    %737 = vrot.lane.b32.xlu0 %v728, 96
    %v738 = vpop.permute.xlu0 %737
    %vm739 = vcmask 785408
    %v740 = vsel %vm739, %v730, %v732
    %v741 = vsel %vm739, %v732, %v734
    %v742 = vsel %vm739, %v734, %v736
    %v743 = vsel %vm739, %v736, %v738
    %v747 = vunpack.c.l.b16 %v471
    %v748 = vunpack.c.h.b16 %v471
    %v749 = vunpack.c.l.b16 %v472
    %v750 = vunpack.c.h.b16 %v472
    %v751 = vunpack.c.l.b16 %v473
    %v752 = vpack.c.b16 %v747, %v747
    %v753 = vpack.c.b16 %v748, %v748
    %v754 = vpack.c.b16 %v749, %v749
    %v755 = vpack.c.b16 %v750, %v750
    %v756 = vpack.c.b16 %v751, %v751
    %v757 = vrot.slane %v752, 2
    %v758 = vrot.slane %v753, 2
    %v759 = vrot.slane %v754, 2
    %v760 = vrot.slane %v755, 2
    %v761 = vrot.slane %v756, 2
    %762 = vrot.lane.b32.xlu0 %v757, 95
    %v763 = vpop.permute.xlu0 %762
    %764 = vrot.lane.b32.xlu0 %v758, 95
    %v765 = vpop.permute.xlu0 %764
    %766 = vrot.lane.b32.xlu0 %v759, 95
    %v767 = vpop.permute.xlu0 %766
    %768 = vrot.lane.b32.xlu0 %v760, 95
    %v769 = vpop.permute.xlu0 %768
    %770 = vrot.lane.b32.xlu0 %v761, 95
    %v771 = vpop.permute.xlu0 %770
    %vm772 = vcmask 777216
    %v773 = vsel %vm772, %v763, %v765
    %v774 = vsel %vm772, %v765, %v767
    %v775 = vsel %vm772, %v767, %v769
    %v776 = vsel %vm772, %v769, %v771
    %v780 = vunpack.c.l.b16 %v546
    %v781 = vunpack.c.h.b16 %v546
    %v782 = vunpack.c.l.b16 %v547
    %v783 = vunpack.c.h.b16 %v547
    %v784 = vunpack.c.l.b16 %v548
    %v785 = vpack.c.b16 %v780, %v780
    %v786 = vpack.c.b16 %v781, %v781
    %v787 = vpack.c.b16 %v782, %v782
    %v788 = vpack.c.b16 %v783, %v783
    %v789 = vpack.c.b16 %v784, %v784
    %790 = vrot.lane.b32.xlu0 %v785, 94
    %v791 = vpop.permute.xlu0 %790
    %792 = vrot.lane.b32.xlu0 %v786, 94
    %v793 = vpop.permute.xlu0 %792
    %794 = vrot.lane.b32.xlu0 %v787, 94
    %v795 = vpop.permute.xlu0 %794
    %796 = vrot.lane.b32.xlu0 %v788, 94
    %v797 = vpop.permute.xlu0 %796
    %798 = vrot.lane.b32.xlu0 %v789, 94
    %v799 = vpop.permute.xlu0 %798
    %vm800 = vcmask 769024
    %v801 = vsel %vm800, %v791, %v793
    %v802 = vsel %vm800, %v793, %v795
    %v803 = vsel %vm800, %v795, %v797
    %v804 = vsel %vm800, %v797, %v799
    %vm805 = vcmask 1041408
    %v808 = vsel %vm805, %v555, %v588
    %v811 = vsel %vm805, %v556, %v589
    %v814 = vsel %vm805, %v557, %v590
    %v817 = vsel %vm805, %v558, %v591
    %v819 = vsel %vm121, %v808, %v616
    %v821 = vsel %vm121, %v811, %v617
    %v823 = vsel %vm121, %v814, %v618
    %v825 = vsel %vm121, %v817, %v619
    %vm826 = vcmask 1045504
    %v828 = vsel %vm826, %v819, %v649
    %v831 = vsel %vm826, %v821, %v650
    %v834 = vsel %vm826, %v823, %v651
    %v837 = vsel %vm826, %v825, %v652
    %v841 = vsel %vm805, %v679, %v712
    %v844 = vsel %vm805, %v680, %v713
    %v847 = vsel %vm805, %v681, %v714
    %v850 = vsel %vm805, %v682, %v715
    %v852 = vsel %vm121, %v841, %v740
    %v854 = vsel %vm121, %v844, %v741
    %v856 = vsel %vm121, %v847, %v742
    %v858 = vsel %vm121, %v850, %v743
    %v860 = vsel %vm826, %v852, %v773
    %v863 = vsel %vm826, %v854, %v774
    %v866 = vsel %vm826, %v856, %v775
    %v869 = vsel %vm826, %v858, %v776
    %v871 = vld [vmem:[#allocation5] sm:$0x3]
    %873 = vset.pattern.permute.xlu0 0
    %874 = vperm.xlu0 %873, %v82
    %v875 = vpop.permute.xlu0 %874
    %vm877 = vcmask 293888
    %v879 = vsel %vm877, %v871, 0
    %v882 = vsel %vm805, %v801, 0
    %v885 = vsel %vm805, %v802, 0
    %v888 = vsel %vm805, %v803, 0
    %v891 = vsel %vm805, %v804, 0
    %893 = vmatpush.bf16.msra.mxu0 0
    %894 = vmatpush.bf16.msra.mxu0 0
    %895 = vmatpush.bf16.msra.mxu0 0
    %896 = vmatpush.bf16.msra.mxu0 0
    %897 = vmatpush.bf16.msra.mxu0 0
    %898 = vmatpush.bf16.msra.mxu0 %v882
    %899 = vmatpush.bf16.msra.mxu0 %v860
    %900 = vmatpush.bf16.msra.mxu0 %v828
    %901 = vmatmul.bf16.gmra.mxu0 %v879
    %v902 = vpop.f32.mrf.mxu0
    %v903 = vadd.f32 %v875, %v902
    %v904 = vpop.f32.mrf.mxu0
    %905 = vdwg.mxu0
    %906 = vmatpush.bf16.msra.mxu0 0
    %907 = vmatpush.bf16.msra.mxu0 0
    %908 = vmatpush.bf16.msra.mxu0 0
    %909 = vmatpush.bf16.msra.mxu0 0
    %910 = vmatpush.bf16.msra.mxu0 0
    %911 = vmatpush.bf16.msra.mxu0 %v885
    %912 = vmatpush.bf16.msra.mxu0 %v863
    %913 = vmatpush.bf16.msra.mxu0 %v831
    %914 = vmatmul.bf16.gmra.mxu0 %v879
    %v915 = vpop.f32.mrf.mxu0
    %v916 = vadd.f32 %v875, %v915
    %v917 = vpop.f32.mrf.mxu0
    %918 = vdwg.mxu0
    %919 = vmatpush.bf16.msra.mxu0 0
    %920 = vmatpush.bf16.msra.mxu0 0
    %921 = vmatpush.bf16.msra.mxu0 0
    %922 = vmatpush.bf16.msra.mxu0 0
    %923 = vmatpush.bf16.msra.mxu0 0
    %924 = vmatpush.bf16.msra.mxu0 %v888
    %925 = vmatpush.bf16.msra.mxu0 %v866
    %926 = vmatpush.bf16.msra.mxu0 %v834
    %927 = vmatmul.bf16.gmra.mxu0 %v879
    %v928 = vpop.f32.mrf.mxu0
    %v929 = vadd.f32 %v875, %v928
    %v930 = vpop.f32.mrf.mxu0
    %931 = vdwg.mxu0
    %932 = vmatpush.bf16.msra.mxu0 0
    %933 = vmatpush.bf16.msra.mxu0 0
    %934 = vmatpush.bf16.msra.mxu0 0
    %935 = vmatpush.bf16.msra.mxu0 0
    %936 = vmatpush.bf16.msra.mxu0 0
    %937 = vmatpush.bf16.msra.mxu0 %v891
    %938 = vmatpush.bf16.msra.mxu0 %v869
    %939 = vmatpush.bf16.msra.mxu0 %v837
    %940 = vmatmul.bf16.gmra.mxu0 %v879
    %v941 = vpop.f32.mrf.mxu0
    %v942 = vadd.f32 %v875, %v941
    %v943 = vpop.f32.mrf.mxu0
    %944 = vdwg.mxu0
    %v945 = vmax.f32 %v903, 0.0
    %v946 = vmax.f32 %v916, 0.0
    %v947 = vmax.f32 %v929, 0.0
    %v948 = vmax.f32 %v942, 0.0
    %v949 = vsel %vm121, %v945, 0.0
    %v950 = vsel %vm121, %v946, 0.0
    %v951 = vadd.f32 %v949, %v950
    %v952 = vsel %vm121, %v947, 0.0
    %v953 = vadd.f32 %v951, %v952
    %v954 = vsel %vm121, %v948, 0.0
    %v955 = vadd.f32 %v953, %v954
    %956 = vadd.xlane.f32.xlu0 %v955
    %v957 = vpop.xlane.xlu0 %956
    %v958 = vmul.f32 %v957, 0.001953125
    %v959 = vsub.f32 %v945, %v958
    %v960 = vsub.f32 %v946, %v958
    %v961 = vsub.f32 %v947, %v958
    %v962 = vsub.f32 %v948, %v958
    %v963 = vmul.f32 %v959, %v959
    %v964 = vmul.f32 %v960, %v960
    %v965 = vmul.f32 %v961, %v961
    %v966 = vmul.f32 %v962, %v962
    %v967 = vsel %vm121, %v963, 0.0
    %v968 = vsel %vm121, %v964, 0.0
    %v969 = vadd.f32 %v967, %v968
    %v970 = vsel %vm121, %v965, 0.0
    %v971 = vadd.f32 %v969, %v970
    %v972 = vsel %vm121, %v966, 0.0
    %v973 = vadd.f32 %v971, %v972
    %974 = vadd.xlane.f32.xlu0 %v973
    %v975 = vpop.xlane.xlu0 %974
    %v976 = vmul.f32 %v975, 0.001953125
    %v977 = vadd.f32 %v976, 1e-05
    %v978 = vrsqrt.pop %v977
    %v979 = vmul.f32 %v978, %v977
    %v980 = vmul.f32 %v979, %v978
    %v981 = vmul.f32 0.5, %v980
    %v982 = vsub.f32 1.5, %v981
    %v983 = vmul.f32 %v978, %v982
    %vm984 = vweird.f32 %v977
    %vm985 = vweird.f32 %v978
    %vm986 = vmor %vm984, %vm985
    %v987 = vsel %vm986, %v978, %v983
    %v988 = vmul.f32 %v987, %v82
    %990 = vset.pattern.permute.xlu0 1
    %991 = vperm.xlu0 %990, %v988
    %v992 = vpop.permute.xlu0 %991
    %v994 = vmul.f32 %v959, %v992
    %v995 = vmul.f32 %v960, %v992
    %v996 = vmul.f32 %v961, %v992
    %v997 = vmul.f32 %v962, %v992
    %998 = vset.pattern.permute.xlu0 2
    %999 = vperm.xlu0 %998, %v82
    %v1000 = vpop.permute.xlu0 %999
    %v1002 = vadd.f32 %v994, %v1000
    %v1003 = vadd.f32 %v995, %v1000
    %v1004 = vadd.f32 %v996, %v1000
    %v1005 = vadd.f32 %v997, %v1000
    %1009 = vst [vmem:[#allocation1] ss:$2 sm:$0xff] %v109
    %s1010 = scalar_lea.vmem [#allocation1], 16
    %1011 = vst [vmem:[%s1010] ss:$2 sm:$0xff] %v110
    %s1012 = scalar_lea.vmem [#allocation1], 32
    %1013 = vst [vmem:[%s1012] ss:$2 sm:$0xff] %v159
    %v1014 = vld.sshfl [vmem:[#allocation1] sm:$0xff pattern:$0x75316420]
    %v1015 = vld.sshfl [vmem:[#allocation1 + $0x8] sm:$0xff pattern:$0x75316420]
    %v1016 = vld.sshfl [vmem:[#allocation1 + $0x10] sm:$0xff pattern:$0x75316420]
    %v1017 = vld.sshfl [vmem:[#allocation1 + $0x18] sm:$0xff pattern:$0x75316420]
    %v1018 = vld.sshfl [vmem:[#allocation1 + $0x20] sm:$0xff pattern:$0x75316420]
    %1019 = vrot.lane.b32.xlu0 %v1014, 111
    %v1020 = vpop.permute.xlu0 %1019
    %1021 = vrot.lane.b32.xlu0 %v1015, 111
    %v1022 = vpop.permute.xlu0 %1021
    %1023 = vrot.lane.b32.xlu0 %v1016, 111
    %v1024 = vpop.permute.xlu0 %1023
    %1025 = vrot.lane.b32.xlu0 %v1017, 111
    %v1026 = vpop.permute.xlu0 %1025
    %1027 = vrot.lane.b32.xlu0 %v1018, 111
    %v1028 = vpop.permute.xlu0 %1027
    %vm1029 = vcmask 908288
    %v1030 = vsel %vm1029, %v1020, %v1022
    %v1031 = vsel %vm1029, %v1022, %v1024
    %v1032 = vsel %vm1029, %v1024, %v1026
    %v1033 = vsel %vm1029, %v1026, %v1028
    %v1038 = vadd.f32 %v1002, %v1030
    %v1039 = vadd.f32 %v1003, %v1031
    %v1040 = vadd.f32 %v1004, %v1032
    %v1041 = vadd.f32 %v1005, %v1033
    %v1042 = vmax.f32 %v1038, 0.0
    %v1043 = vmax.f32 %v1039, 0.0
    %v1044 = vmax.f32 %v1040, 0.0
    %v1045 = vmax.f32 %v1041, 0.0
    %v1050 = vrot.slane %v1043, 4
    %v1051 = vrot.slane %v1045, 4
    %v1052 = vsel %vm121, %v1042, %v1050
    %v1053 = vsel %vm121, %v1044, %v1051
    %1056 = vst [vmem:[#allocation10] sm:$0xff] %v1052
    %1057 = vst [vmem:[#allocation10 + $0x8] sm:$0xff] %v1053
    // Predicated region
    $region34: #{tpu_custom_call.1} parent=1 // pred_check
      _
    $region35: #{tpu_custom_call.1} parent=1 // pred_check_branch
      %1059 = sbr.rel (0) target = $region37
    $region36: #{tpu_custom_call.1} parent=1 // pred_region
      %1061 = vsyncadd [#allocation4], 0
      %s1063 = sshll.u32 [#allocation10], 4
      %s1064 = int_to_ptr.vmem [resolvable:$true] %s1063
      %s1065 = sshll.u32 %s4, 4
      %s1066 = int_to_ptr.hbm [resolvable:$true] %s1065
      %1068 = dma.vmem_to_hbm [thread:$0]  %s1064, 256, %s1066, [#allocation4]
    $region37: #{tpu_custom_call.1} parent=1 // pred_fallthru
      _
    // Predicated region
    $region38: #{tpu_custom_call.1} parent=1 // pred_check
      _
    $region39: #{tpu_custom_call.1} parent=1 // pred_check_branch
      %1070 = sbr.rel (0) target = $region41
    $region40: #{tpu_custom_call.1} parent=1 // pred_region
      %1072 = dma.done [#allocation4], 256
    $region41: #{tpu_custom_call.1} parent=1 // pred_fallthru
      _
    %1073 = vsyncpa [#allocation3], 1
    %1074 = vsyncpa [#allocation6], 1
    %1075 = vsyncpa [#allocation9], 1
    %1076 = vsyncpa [#allocation4], 1

</llo_original>
